<compile_context>
chip_gen: v7x
topology: tpu7x:2x2x1
jax: 0.10.0
libtpu: 0.0.40
codegen_flags: <defaults>
</compile_context>

<pallas_src>
import jax
import jax.numpy as jnp
from jax.experimental import pallas as pl
from jax.experimental.pallas import tpu as pltpu

LANES = 512            # lane-dense last dim (multiple of 128 -> unmasked stores)
TILE_R = 512           # rows per grid step; ~85% of HBM roofline per measurements,
                       # double-buffered working set stays well under v7x's 64 MiB VMEM
MIN_GRID = 4           # keep >= 4 grid steps so v7x's two TensorCores stay loaded
VMEM_LIMIT_BYTES = 48 * 1024 * 1024   # explicit scoped-VMEM budget (<= v7x 64 MiB physical)


def _make_loss_kernel(tile_r, rows_valid):
    # Only the last grid step can be partial; gate the row mask at trace time.
    need_row_mask = (rows_valid % tile_r) != 0

    def kernel(b_ref, t_ref, bt_ref, tt_ref, bm_ref, tm_ref, negmap_ref, part_ref):
        # Cast narrow input dtypes (bf16 logits, int8/bool masks) to f32 on the VPU.
        b = b_ref[...].astype(jnp.float32)
        t = t_ref[...].astype(jnp.float32)
        b_true = bt_ref[...].astype(jnp.float32)
        t_true = tt_ref[...].astype(jnp.float32)
        b_mask = bm_ref[...].astype(jnp.float32)
        t_mask = tm_ref[...].astype(jnp.float32)

        if need_row_mask:
            # Zero the out-of-range rows of the partial last block so garbage
            # read past the array edge never reaches a sum or the negmap.
            row0 = pl.program_id(0) * tile_r
            rid = jax.lax.broadcasted_iota(jnp.int32, (tile_r, LANES), 0) + row0
            valid = rid < rows_valid
            b = jnp.where(valid, b, 0.0)
            t = jnp.where(valid, t, 0.0)
            b_true = jnp.where(valid, b_true, 0.0)
            t_true = jnp.where(valid, t_true, 0.0)
            b_mask = jnp.where(valid, b_mask, 0.0)
            t_mask = jnp.where(valid, t_mask, 0.0)

        # Stable BCE-with-logits: max(x,0) - x*z + log1p(exp(-|x|)).
        e_b = jnp.exp(-jnp.abs(b))
        bce = jnp.maximum(b, 0.0) - b * b_true + jnp.log1p(e_b)

        # Sigmoids via tanh: sigmoid(x) = 0.5*(tanh(x/2)+1) -> one EUP pass each,
        # no per-element division (replaces exp + divide; exact to ~ulp level).
        sig_b = 0.5 * (jnp.tanh(0.5 * b) + 1.0)
        sig_t = 0.5 * (jnp.tanh(0.5 * t) + 1.0)
        # DiceLoss gate: sigmoid(50*(sig_b - sig_t)) == 0.5*(tanh(25*(...)) + 1).
        d = 0.5 * (jnp.tanh(25.0 * (sig_b - sig_t)) + 1.0)

        positive = b_true * b_mask          # targets/masks are binary (ref uses .byte())
        negative = b_mask - positive        # == (1 - b_true) * b_mask for binary targets
        neg_loss = bce * negative
        negmap_ref[...] = neg_loss          # streamed out for the top-k selection

        l1 = jnp.abs(sig_t - t_true) * t_mask

        def rowsum(x):                      # collapse sublanes -> (1, LANES)
            return jnp.sum(x, axis=0, keepdims=True)

        # Single aligned (8, LANES) store (no per-row masked vst.msk stores).
        part_ref[...] = jnp.concatenate(
            [rowsum(positive),              # 0: positive_count (== dice target union)
             rowsum(b_mask),                # 1: mask count (negative_count = [1] - [0])
             rowsum(bce * positive),        # 2: positive BCE loss sum
             rowsum(d * positive),          # 3: dice intersection
             rowsum(d * b_mask),            # 4: dice union (prediction side)
             rowsum(t_mask),                # 5: L1 mask sum
             rowsum(l1),                    # 6: masked L1 sum
             rowsum(neg_loss)],             # 7: total negative BCE loss (top-k fast path)
            axis=0)

    return kernel


def compute_loss(b, t, b_true, t_true, b_mask, t_mask,
                 eps=1e-6, l1_scale=10.0, bce_scale=5.0, negative_ratio=3.0,
                 top_k_cap=None):
    """b, t, b_true: (N,1,H,W); t_true, b_mask, t_mask: (N,H,W). Returns scalar loss."""
    N, H, W = b.shape[0], b.shape[-2], b.shape[-1]
    total = N * H * W
    rows = pl.cdiv(total, LANES)

    if rows <= TILE_R:
        tile_r = rows                       # single block == full array (any row count ok)
    else:
        # Aim for >= MIN_GRID grid steps (v7x dual-TC load balance); keep the row
        # block a multiple of 32 so int8/bool/bf16 inputs stay tile-aligned.
        per_step = pl.cdiv(rows, MIN_GRID)
        tile_r = min(TILE_R, ((per_step + 31) // 32) * 32)
    num_tiles = pl.cdiv(rows, tile_r)

    lane_pad = rows * LANES - total

    def flat2d(x):
        # Keep native dtype (bf16 / int8 / bool) -- the kernel is HBM-bandwidth bound.
        x = x.reshape(-1)
        if lane_pad:
            # Only when N*H*W % 512 != 0 (rare for DBNet shapes); pads with zeros,
            # which carry zero masks and contribute nothing to any sum.
            x = jnp.pad(x, (0, lane_pad))
        return x.reshape(rows, LANES)

    tile_spec = pl.BlockSpec((tile_r, LANES), lambda i: (i, 0))
    part_spec = pl.BlockSpec((None, 8, LANES), lambda i: (i, 0, 0))

    neg_map, partials = pl.pallas_call(
        _make_loss_kernel(tile_r, rows),
        grid=(num_tiles,),
        in_specs=[tile_spec] * 6,
        out_specs=(tile_spec, part_spec),
        out_shape=(jax.ShapeDtypeStruct((rows, LANES), jnp.float32),
                   jax.ShapeDtypeStruct((num_tiles, 8, LANES), jnp.float32)),
        compiler_params=pltpu.CompilerParams(
            # per-tile outputs are race-free -> grid can shard across both TCs on v7x
            dimension_semantics=("parallel",),
            vmem_limit_bytes=VMEM_LIMIT_BYTES),
    )(flat2d(b), flat2d(t), flat2d(b_true), flat2d(t_true),
      flat2d(b_mask), flat2d(t_mask))

    sums = jnp.sum(partials, axis=(0, 2))   # tiny (num_tiles, 8, 512) reduction
    pos_sum = sums[0]
    bmask_sum = sums[1]
    pos_loss_sum = sums[2]
    inter = sums[3]
    union_b = sums[4]
    tmask_sum = sums[5]
    l1_sum = sums[6]
    neg_loss_sum = sums[7]

    # ---- BalancedCELoss: top-k over negative losses (runtime k) --------------
    pos_cnt = jnp.floor(pos_sum)
    neg_cnt = jnp.floor(bmask_sum - pos_sum)
    negative_count = jnp.minimum(neg_cnt, jnp.floor(pos_cnt * negative_ratio))

    def _all_negatives(_):
        # k == negative_count == neg_cnt: the top-k keeps every negative, so the
        # in-kernel sum is the exact answer (all negative-position losses are > 0).
        return neg_loss_sum

    def _topk_negatives(_):
        flat_neg = neg_map.reshape(-1)[:total]        # drop the zero lane padding
        # NOTE: if top_k_cap is passed and 3*positive_count exceeds it, the
        # negative sum is silently truncated (documented opt-in approximation).
        k_static = (flat_neg.shape[0] if top_k_cap is None
                    else min(int(top_k_cap), flat_neg.shape[0]))
        top_vals = jax.lax.top_k(flat_neg, k_static)[0]
        rank = jnp.arange(k_static, dtype=jnp.float32)
        return jnp.sum(jnp.where(rank < negative_count, top_vals, 0.0))

    neg_topk_sum = jax.lax.cond(negative_count >= neg_cnt,
                                _all_negatives, _topk_negatives, None)
    bce_loss = (pos_loss_sum + neg_topk_sum) / (pos_cnt + negative_count + eps)

    # ---- DiceLoss (target-side union == positive sum, reused) ----------------
    dice_loss = 1.0 - 2.0 * inter / (union_b + pos_sum + eps)

    # ---- MaskL1Loss -----------------------------------------------------------
    safe_ms = jnp.where(tmask_sum > 0.0, tmask_sum, 1.0)
    mask_loss = jnp.where(tmask_sum > 0.0, l1_sum / safe_ms, 0.0)

    return bce_loss * bce_scale + dice_loss + l1_scale * mask_loss


def _reference_loss(b, t, b_true, t_true, b_mask, t_mask,
                    eps=1e-6, l1_scale=10.0, bce_scale=5.0, negative_ratio=3.0):
    """Pure-JAX mirror of the PyTorch ComputeLoss forward (for validation)."""
    bf = b[:, 0].astype(jnp.float32)
    tf = t[:, 0].astype(jnp.float32)
    bt = b_true[:, 0].astype(jnp.float32)
    tt = t_true.astype(jnp.float32)
    bm = b_mask.astype(jnp.float32)
    tm = t_mask.astype(jnp.float32)
    bce = jnp.maximum(bf, 0.0) - bf * bt + jnp.log1p(jnp.exp(-jnp.abs(bf)))
    positive = bt * bm
    negative = (1.0 - bt) * bm
    pos_cnt = jnp.floor(positive.sum())
    k = jnp.minimum(jnp.floor(negative.sum()), jnp.floor(pos_cnt * negative_ratio))
    neg_sorted = jnp.sort((bce * negative).reshape(-1))[::-1]
    rank = jnp.arange(neg_sorted.shape[0], dtype=jnp.float32)
    bce_loss = ((bce * positive).sum()
                + jnp.sum(jnp.where(rank < k, neg_sorted, 0.0))) / (pos_cnt + k + eps)
    sb, st = jax.nn.sigmoid(bf), jax.nn.sigmoid(tf)
    d = jax.nn.sigmoid(50.0 * (sb - st))
    dice = 1.0 - 2.0 * (d * bt * bm).sum() / ((d * bm).sum() + (bt * bm).sum() + eps)
    ms = tm.sum()
    l1 = jnp.where(ms == 0.0, 0.0,
                   (jnp.abs(st - tt) * tm).sum() / jnp.where(ms == 0.0, 1.0, ms))
    return bce_loss * bce_scale + dice + l1_scale * l1


if __name__ == "__main__":
    root = jax.random.PRNGKey(0)
    key_a, key_b = jax.random.split(root, 2)

    def make_inputs(key, N, H, W, pos_prob):
        k1, k2, k3, k4, k5, k6 = jax.random.split(key, 6)
        b = jax.random.normal(k1, (N, 1, H, W), dtype=jnp.float32)          # logits
        t = jax.random.normal(k2, (N, 1, H, W), dtype=jnp.float32)          # logits
        b_true = jax.random.bernoulli(k3, pos_prob, (N, 1, H, W)).astype(jnp.int8)
        t_true = jax.random.uniform(k4, (N, H, W), dtype=jnp.float32)
        b_mask = jax.random.bernoulli(k5, 0.8, (N, H, W)).astype(jnp.int8)
        t_mask = jax.random.bernoulli(k6, 0.8, (N, H, W)).astype(jnp.int8)
        return b, t, b_true, t_true, b_mask, t_mask

    loss_fn = jax.jit(compute_loss)

    # Small case from the module spec: single exact block, all-negatives fast path.
    args1 = make_inputs(key_a, 2, 16, 16, 0.3)
    loss1 = loss_fn(*args1)
    jax.block_until_ready(loss1)
    ref1 = _reference_loss(*args1)
    assert loss1.shape == () and bool(jnp.isfinite(loss1)), loss1
    assert jnp.allclose(loss1, ref1, rtol=1e-3, atol=1e-3), (loss1, ref1)

    # Larger case: multi-tile grid, partial last block (row masking), lane padding,
    # and the runtime top-k branch (3*positive_count < negative_count).
    args2 = make_inputs(key_b, 2, 364, 364, 0.1)
    loss2 = loss_fn(*args2)
    jax.block_until_ready(loss2)
    ref2 = _reference_loss(*args2)
    assert loss2.shape == () and bool(jnp.isfinite(loss2)), loss2
    assert jnp.allclose(loss2, ref2, rtol=1e-3, atol=1e-3), (loss2, ref2)

    print("KERNEL_OK")
</pallas_src>

<mosaic_0001>
module attributes {stable_mosaic.version = 11 : i64} {
  func.func @kernel(%arg0: i32, %arg1: memref<1x512xf32, #tpu.memory_space<vmem>>, %arg2: memref<1x512xf32, #tpu.memory_space<vmem>>, %arg3: memref<1x512xi8, #tpu.memory_space<vmem>>, %arg4: memref<1x512xf32, #tpu.memory_space<vmem>>, %arg5: memref<1x512xi8, #tpu.memory_space<vmem>>, %arg6: memref<1x512xi8, #tpu.memory_space<vmem>>, %arg7: memref<1x512xf32, #tpu.memory_space<vmem>>, %arg8: memref<1x8x512xf32, #tpu.memory_space<vmem>>) attributes {dimension_semantics = [#tpu.dimension_semantics<parallel>], iteration_bounds = array<i64: 1>, scalar_prefetch = 0 : i64, scratch_operands = 0 : i64, tpu.core_type = #tpu.core_type<tc>, window_params = [{transform_indices = @transform_0, window_bounds = array<i64: 1, 512>}, {transform_indices = @transform_1, window_bounds = array<i64: 1, 512>}, {transform_indices = @transform_2, window_bounds = array<i64: 1, 512>}, {transform_indices = @transform_3, window_bounds = array<i64: 1, 512>}, {transform_indices = @transform_4, window_bounds = array<i64: 1, 512>}, {transform_indices = @transform_5, window_bounds = array<i64: 1, 512>}, {transform_indices = @transform_6, window_bounds = array<i64: 1, 512>}, {transform_indices = @transform_7, window_bounds = array<i64: 1, 8, 512>}]} {
    %c0 = arith.constant 0 : index
    %c0_0 = arith.constant 0 : index
    %0 = vector.load %arg1[%c0, %c0_0] : memref<1x512xf32, #tpu.memory_space<vmem>>, vector<1x512xf32>
    %c0_1 = arith.constant 0 : index
    %c0_2 = arith.constant 0 : index
    %1 = vector.load %arg2[%c0_1, %c0_2] : memref<1x512xf32, #tpu.memory_space<vmem>>, vector<1x512xf32>
    %c0_3 = arith.constant 0 : index
    %c0_4 = arith.constant 0 : index
    %2 = vector.load %arg3[%c0_3, %c0_4] : memref<1x512xi8, #tpu.memory_space<vmem>>, vector<1x512xi8>
    %3 = arith.sitofp %2 : vector<1x512xi8> to vector<1x512xf32>
    %c0_5 = arith.constant 0 : index
    %c0_6 = arith.constant 0 : index
    %4 = vector.load %arg4[%c0_5, %c0_6] : memref<1x512xf32, #tpu.memory_space<vmem>>, vector<1x512xf32>
    %c0_7 = arith.constant 0 : index
    %c0_8 = arith.constant 0 : index
    %5 = vector.load %arg5[%c0_7, %c0_8] : memref<1x512xi8, #tpu.memory_space<vmem>>, vector<1x512xi8>
    %6 = arith.sitofp %5 : vector<1x512xi8> to vector<1x512xf32>
    %c0_9 = arith.constant 0 : index
    %c0_10 = arith.constant 0 : index
    %7 = vector.load %arg6[%c0_9, %c0_10] : memref<1x512xi8, #tpu.memory_space<vmem>>, vector<1x512xi8>
    %8 = arith.sitofp %7 : vector<1x512xi8> to vector<1x512xf32>
    %9 = math.absf %0 : vector<1x512xf32>
    %cst = arith.constant 0.000000e+00 : f32
    %10 = vector.broadcast %cst : f32 to vector<1x512xf32>
    %11 = arith.subf %10, %9 : vector<1x512xf32>
    %12 = math.exp %11 : vector<1x512xf32>
    %cst_11 = arith.constant 0.000000e+00 : f32
    %13 = vector.broadcast %cst_11 : f32 to vector<1x512xf32>
    %14 = arith.maximumf %0, %13 : vector<1x512xf32>
    %15 = arith.mulf %0, %3 : vector<1x512xf32>
    %16 = arith.subf %14, %15 : vector<1x512xf32>
    %17 = math.log1p %12 : vector<1x512xf32>
    %18 = arith.addf %16, %17 : vector<1x512xf32>
    %cst_12 = arith.constant 5.000000e-01 : f32
    %19 = vector.broadcast %cst_12 : f32 to vector<1x512xf32>
    %20 = arith.mulf %19, %0 : vector<1x512xf32>
    %21 = math.tanh %20 : vector<1x512xf32>
    %cst_13 = arith.constant 1.000000e+00 : f32
    %22 = vector.broadcast %cst_13 : f32 to vector<1x512xf32>
    %23 = arith.addf %21, %22 : vector<1x512xf32>
    %cst_14 = arith.constant 5.000000e-01 : f32
    %24 = vector.broadcast %cst_14 : f32 to vector<1x512xf32>
    %25 = arith.mulf %24, %23 : vector<1x512xf32>
    %cst_15 = arith.constant 5.000000e-01 : f32
    %26 = vector.broadcast %cst_15 : f32 to vector<1x512xf32>
    %27 = arith.mulf %26, %1 : vector<1x512xf32>
    %28 = math.tanh %27 : vector<1x512xf32>
    %cst_16 = arith.constant 1.000000e+00 : f32
    %29 = vector.broadcast %cst_16 : f32 to vector<1x512xf32>
    %30 = arith.addf %28, %29 : vector<1x512xf32>
    %cst_17 = arith.constant 5.000000e-01 : f32
    %31 = vector.broadcast %cst_17 : f32 to vector<1x512xf32>
    %32 = arith.mulf %31, %30 : vector<1x512xf32>
    %33 = arith.subf %25, %32 : vector<1x512xf32>
    %cst_18 = arith.constant 2.500000e+01 : f32
    %34 = vector.broadcast %cst_18 : f32 to vector<1x512xf32>
    %35 = arith.mulf %34, %33 : vector<1x512xf32>
    %36 = math.tanh %35 : vector<1x512xf32>
    %cst_19 = arith.constant 1.000000e+00 : f32
    %37 = vector.broadcast %cst_19 : f32 to vector<1x512xf32>
    %38 = arith.addf %36, %37 : vector<1x512xf32>
    %cst_20 = arith.constant 5.000000e-01 : f32
    %39 = vector.broadcast %cst_20 : f32 to vector<1x512xf32>
    %40 = arith.mulf %39, %38 : vector<1x512xf32>
    %41 = arith.mulf %3, %6 : vector<1x512xf32>
    %42 = arith.subf %6, %41 : vector<1x512xf32>
    %43 = arith.mulf %18, %42 : vector<1x512xf32>
    %c0_21 = arith.constant 0 : index
    %c0_22 = arith.constant 0 : index
    %44 = vector.load %arg7[%c0_21, %c0_22] : memref<1x512xf32, #tpu.memory_space<vmem>>, vector<1x512xf32>
    tpu.vector_store %arg7[%c0_21, %c0_22], %43 {strides = array<i32>} : memref<1x512xf32, #tpu.memory_space<vmem>>, vector<1x512xf32>,
    %45 = arith.subf %32, %4 : vector<1x512xf32>
    %46 = math.absf %45 : vector<1x512xf32>
    %47 = arith.mulf %46, %8 : vector<1x512xf32>
    %cst_23 = arith.constant dense<0.000000e+00> : vector<512xf32>
    %48 = vector.multi_reduction <add>, %41, %cst_23 [0] : vector<1x512xf32> to vector<512xf32>
    %49 = vector.shape_cast %48 : vector<512xf32> to vector<1x512xf32>
    %cst_24 = arith.constant dense<0.000000e+00> : vector<512xf32>
    %50 = vector.multi_reduction <add>, %6, %cst_24 [0] : vector<1x512xf32> to vector<512xf32>
    %51 = vector.shape_cast %50 : vector<512xf32> to vector<1x512xf32>
    %52 = arith.mulf %18, %41 : vector<1x512xf32>
    %cst_25 = arith.constant dense<0.000000e+00> : vector<512xf32>
    %53 = vector.multi_reduction <add>, %52, %cst_25 [0] : vector<1x512xf32> to vector<512xf32>
    %54 = vector.shape_cast %53 : vector<512xf32> to vector<1x512xf32>
    %55 = arith.mulf %40, %41 : vector<1x512xf32>
    %cst_26 = arith.constant dense<0.000000e+00> : vector<512xf32>
    %56 = vector.multi_reduction <add>, %55, %cst_26 [0] : vector<1x512xf32> to vector<512xf32>
    %57 = vector.shape_cast %56 : vector<512xf32> to vector<1x512xf32>
    %58 = arith.mulf %40, %6 : vector<1x512xf32>
    %cst_27 = arith.constant dense<0.000000e+00> : vector<512xf32>
    %59 = vector.multi_reduction <add>, %58, %cst_27 [0] : vector<1x512xf32> to vector<512xf32>
    %60 = vector.shape_cast %59 : vector<512xf32> to vector<1x512xf32>
    %cst_28 = arith.constant dense<0.000000e+00> : vector<512xf32>
    %61 = vector.multi_reduction <add>, %8, %cst_28 [0] : vector<1x512xf32> to vector<512xf32>
    %62 = vector.shape_cast %61 : vector<512xf32> to vector<1x512xf32>
    %cst_29 = arith.constant dense<0.000000e+00> : vector<512xf32>
    %63 = vector.multi_reduction <add>, %47, %cst_29 [0] : vector<1x512xf32> to vector<512xf32>
    %64 = vector.shape_cast %63 : vector<512xf32> to vector<1x512xf32>
    %cst_30 = arith.constant dense<0.000000e+00> : vector<512xf32>
    %65 = vector.multi_reduction <add>, %43, %cst_30 [0] : vector<1x512xf32> to vector<512xf32>
    %66 = vector.shape_cast %65 : vector<512xf32> to vector<1x512xf32>
    %67 = tpu.concatenate %49, %51, %54, %57, %60, %62, %64, %66 in 0 : vector<1x512xf32>, vector<1x512xf32>, vector<1x512xf32>, vector<1x512xf32>, vector<1x512xf32>, vector<1x512xf32>, vector<1x512xf32>, vector<1x512xf32> -> vector<8x512xf32>
    %c0_31 = arith.constant 0 : index
    %c0_32 = arith.constant 0 : index
    %c0_33 = arith.constant 0 : index
    %68 = vector.load %arg8[%c0_31, %c0_32, %c0_33] : memref<1x8x512xf32, #tpu.memory_space<vmem>>, vector<1x8x512xf32>
    %69 = vector.shape_cast %68 : vector<1x8x512xf32> to vector<8x512xf32>
    %70 = vector.shape_cast %67 : vector<8x512xf32> to vector<1x8x512xf32>
    tpu.vector_store %arg8[%c0_31, %c0_32, %c0_33], %70 {strides = array<i32>} : memref<1x8x512xf32, #tpu.memory_space<vmem>>, vector<1x8x512xf32>,
    return
  }
  func.func @transform_0(%arg0: i32) -> (i32, i32) {
    %c0_i32 = arith.constant 0 : i32
    %c0_i32_0 = arith.constant 0 : i32
    return %arg0, %c0_i32 : i32, i32
  }
  func.func @transform_1(%arg0: i32) -> (i32, i32) {
    %c0_i32 = arith.constant 0 : i32
    %c0_i32_0 = arith.constant 0 : i32
    return %arg0, %c0_i32 : i32, i32
  }
  func.func @transform_2(%arg0: i32) -> (i32, i32) {
    %c0_i32 = arith.constant 0 : i32
    %c0_i32_0 = arith.constant 0 : i32
    return %arg0, %c0_i32 : i32, i32
  }
  func.func @transform_3(%arg0: i32) -> (i32, i32) {
    %c0_i32 = arith.constant 0 : i32
    %c0_i32_0 = arith.constant 0 : i32
    return %arg0, %c0_i32 : i32, i32
  }
  func.func @transform_4(%arg0: i32) -> (i32, i32) {
    %c0_i32 = arith.constant 0 : i32
    %c0_i32_0 = arith.constant 0 : i32
    return %arg0, %c0_i32 : i32, i32
  }
  func.func @transform_5(%arg0: i32) -> (i32, i32) {
    %c0_i32 = arith.constant 0 : i32
    %c0_i32_0 = arith.constant 0 : i32
    return %arg0, %c0_i32 : i32, i32
  }
  func.func @transform_6(%arg0: i32) -> (i32, i32) {
    %c0_i32 = arith.constant 0 : i32
    %c0_i32_0 = arith.constant 0 : i32
    return %arg0, %c0_i32 : i32, i32
  }
  func.func @transform_7(%arg0: i32) -> (i32, i32, i32) {
    %c0_i32 = arith.constant 0 : i32
    %c0_i32_0 = arith.constant 0 : i32
    %c0_i32_1 = arith.constant 0 : i32
    return %arg0, %c0_i32, %c0_i32_0 : i32, i32, i32
  }
}

</mosaic_0001>

<llo_original>
// kernel: compute_loss.1
$region0: #{compute_loss.1}
  #allocation0 [shape = 'u32[]', space=smem, size = 0x4, offset = 0x4, fixed_abs, tag = 'smem constant byte address 0x4 - core index']
  #allocation1 [shape = 'u32[144,128]{1,0:T(1,128)}', space=vmem, size = 0x12000, scoped, tag = 'internal scratch']
  %s0 = inlined_call_operand.vmem [shape: f32[1,512], index: 0, kind: input, shape index: {}]
  %s1 = inlined_call_operand.vmem [shape: f32[1,512], index: 1, kind: input, shape index: {}]
  %s2 = inlined_call_operand.vmem [shape: s8[1,512], index: 2, kind: input, shape index: {}]
  %s3 = inlined_call_operand.vmem [shape: f32[1,512], index: 3, kind: input, shape index: {}]
  %s4 = inlined_call_operand.vmem [shape: s8[1,512], index: 4, kind: input, shape index: {}]
  %s5 = inlined_call_operand.vmem [shape: s8[1,512], index: 5, kind: input, shape index: {}]
  %s6 = inlined_call_operand.vmem [shape: f32[1,512], index: 6, kind: output, shape index: {0}]
  %s7 = inlined_call_operand.vmem [shape: f32[1,8,512], index: 7, kind: output, shape index: {1}]
  %8 = xla_tuple %s6, %s7
  %s9 = sld [smem:[#allocation0]]
  $region42: #{compute_loss.1} parent=0
    _
  %s11 = ssub.s32 1, %s9
  %s12 = scalar_select 0, %s11, %s9
  // Predicated region
  $region2: #{compute_loss.1} parent=0 // pred_check
    _
  $region3: #{compute_loss.1} parent=0 // pred_check_branch
    %14 = sbr.rel (0) target = $region5
  $region4: #{compute_loss.1} parent=0 // pred_region
    _
  $region5: #{compute_loss.1} parent=0 // pred_fallthru
    _
  // Predicated region
  $region6: #{compute_loss.1} parent=0 // pred_check
    _
  $region7: #{compute_loss.1} parent=0 // pred_check_branch
    %16 = sbr.rel (0) target = $region9
  $region8: #{compute_loss.1} parent=0 // pred_region
    _
  $region9: #{compute_loss.1} parent=0 // pred_fallthru
    _
  // Predicated region
  $region10: #{compute_loss.1} parent=0 // pred_check
    _
  $region11: #{compute_loss.1} parent=0 // pred_check_branch
    %18 = sbr.rel (0) target = $region13
  $region12: #{compute_loss.1} parent=0 // pred_region
    _
  $region13: #{compute_loss.1} parent=0 // pred_fallthru
    _
  // Predicated region
  $region14: #{compute_loss.1} parent=0 // pred_check
    _
  $region15: #{compute_loss.1} parent=0 // pred_check_branch
    %20 = sbr.rel (0) target = $region17
  $region16: #{compute_loss.1} parent=0 // pred_region
    _
  $region17: #{compute_loss.1} parent=0 // pred_fallthru
    _
  // Predicated region
  $region18: #{compute_loss.1} parent=0 // pred_check
    _
  $region19: #{compute_loss.1} parent=0 // pred_check_branch
    %22 = sbr.rel (0) target = $region21
  $region20: #{compute_loss.1} parent=0 // pred_region
    _
  $region21: #{compute_loss.1} parent=0 // pred_fallthru
    _
  // Predicated region
  $region22: #{compute_loss.1} parent=0 // pred_check
    _
  $region23: #{compute_loss.1} parent=0 // pred_check_branch
    %24 = sbr.rel (0) target = $region25
  $region24: #{compute_loss.1} parent=0 // pred_region
    _
  $region25: #{compute_loss.1} parent=0 // pred_fallthru
    _
  %v25 = vld [vmem:[%s0] sm:$0xf]
  %v26 = vld [vmem:[%s1] sm:$0xf]
  %v27 = vld [vmem:[%s2] sm:$0xf]
  %v28 = vunpack.c.0.s8 %v27
  %v29 = vunpack.c.1.s8 %v27
  %v30 = vcvt.s32.f32 %v28
  %v31 = vcvt.s32.f32 %v29
  %v32 = vld [vmem:[%s3] sm:$0xf]
  %v33 = vld [vmem:[%s4] sm:$0xf]
  %v34 = vunpack.c.0.s8 %v33
  %v35 = vunpack.c.1.s8 %v33
  %v36 = vcvt.s32.f32 %v34
  %v37 = vcvt.s32.f32 %v35
  %v38 = vld [vmem:[%s5] sm:$0xf]
  %v39 = vunpack.c.0.s8 %v38
  %v40 = vunpack.c.1.s8 %v38
  %v41 = vcvt.s32.f32 %v39
  %v42 = vcvt.s32.f32 %v40
  %v43 = vand.u32 2147483647, %v25
  %v44 = vsub.f32 0.0, %v43
  %v45 = vmul.f32 %v44, 1.442695
  %v46 = vpow.pop %v45
  %v47 = vmax.f32 %v25, 0.0
  %v51 = vunpack.c.l.s4 1966171168
  %v52 = vunpack.c.0.s8 %v51
  %v53 = vlaneseq
  %v54 = vshrl.u32 %v53, 7
  %v55 = vsub.s32 %v52, %v54
  %v56 = vrot.slane %v30, %v55
  %v58 = vunpack.c.l.s4 1966171168
  %v59 = vunpack.c.0.s8 %v58
  %v60 = vlaneseq
  %v61 = vshrl.u32 %v60, 7
  %v62 = vsub.s32 %v59, %v61
  %v63 = vrot.slane %v31, %v62
  %v64 = vcombine.low %v56, %v63
  %v66 = vunpack.c.l.s4 1966171168
  %v67 = vunpack.c.0.s8 %v66
  %v68 = vlaneseq
  %v69 = vshrl.u32 %v68, 7
  %v70 = vsub.s32 %v67, %v69
  %v71 = vrot.slane %v64, %v70
  %v73 = vmul.f32 %v25, %v71
  %v74 = vsub.f32 %v47, %v73
  %v75 = vadd.f32 %v46, 1.0
  %v76 = vlog2.pop %v75
  %v77 = vmul.f32 %v76, 0.6931472
  %v78 = vmul.f32 -0.5, %v46
  %v79 = vadd.f32 %v78, 1.0
  %v80 = vmul.f32 %v79, %v46
  %v81 = vand.u32 2147483647, %v46
  %vm82 = vcmp.lt.f32.partialorder %v81, 0.0004427343
  %v83 = vsel %vm82, %v80, %v77
  %v84 = vadd.f32 %v74, %v83
  %v85 = vmul.f32 %v25, 0.5
  %v86 = vtanh.pop %v85
  %v87 = vadd.f32 %v86, 1.0
  %v88 = vmul.f32 %v87, 0.5
  %v89 = vmul.f32 %v26, 0.5
  %v90 = vtanh.pop %v89
  %v91 = vadd.f32 %v90, 1.0
  %v92 = vmul.f32 %v91, 0.5
  %v93 = vsub.f32 %v88, %v92
  %v94 = vmul.f32 %v93, 25.0
  %v95 = vtanh.pop %v94
  %v96 = vadd.f32 %v95, 1.0
  %v97 = vmul.f32 %v96, 0.5
  %v98 = vmul.f32 %v30, %v36
  %v99 = vmul.f32 %v31, %v37
  %v100 = vsub.f32 %v36, %v98
  %v101 = vsub.f32 %v37, %v99
  %v105 = vunpack.c.l.s4 1966171168
  %v106 = vunpack.c.0.s8 %v105
  %v107 = vlaneseq
  %v108 = vshrl.u32 %v107, 7
  %v109 = vsub.s32 %v106, %v108
  %v110 = vrot.slane %v100, %v109
  %v112 = vunpack.c.l.s4 1966171168
  %v113 = vunpack.c.0.s8 %v112
  %v114 = vlaneseq
  %v115 = vshrl.u32 %v114, 7
  %v116 = vsub.s32 %v113, %v115
  %v117 = vrot.slane %v101, %v116
  %v118 = vcombine.low %v110, %v117
  %v120 = vunpack.c.l.s4 1966171168
  %v121 = vunpack.c.0.s8 %v120
  %v122 = vlaneseq
  %v123 = vshrl.u32 %v122, 7
  %v124 = vsub.s32 %v121, %v123
  %v125 = vrot.slane %v118, %v124
  %v127 = vmul.f32 %v84, %v125
  %v128 = vlaneseq
  %vm129 = vcmp.ge.s32.totalorder %v128, 0
  %vm130 = vcmp.lt.s32.totalorder %v128, 512
  %vm131 = vmand %vm129, %vm130
  %132 = vst.msk [vmem:[%s6] sm:$0xf] %vm131, %v127
  %v133 = vsub.f32 %v92, %v32
  %v134 = vand.u32 2147483647, %v133
  %v138 = vunpack.c.l.s4 1966171168
  %v139 = vunpack.c.0.s8 %v138
  %v140 = vlaneseq
  %v141 = vshrl.u32 %v140, 7
  %v142 = vsub.s32 %v139, %v141
  %v143 = vrot.slane %v41, %v142
  %v145 = vunpack.c.l.s4 1966171168
  %v146 = vunpack.c.0.s8 %v145
  %v147 = vlaneseq
  %v148 = vshrl.u32 %v147, 7
  %v149 = vsub.s32 %v146, %v148
  %v150 = vrot.slane %v42, %v149
  %v151 = vcombine.low %v143, %v150
  %v153 = vunpack.c.l.s4 1966171168
  %v154 = vunpack.c.0.s8 %v153
  %v155 = vlaneseq
  %v156 = vshrl.u32 %v155, 7
  %v157 = vsub.s32 %v154, %v156
  %v158 = vrot.slane %v151, %v157
  %v160 = vmul.f32 %v134, %v158
  %v161 = vadd.f32 %v98, 0.0
  %v162 = vadd.f32 %v99, 0.0
  %v163 = vadd.f32 %v36, 0.0
  %v164 = vadd.f32 %v37, 0.0
  %v168 = vunpack.c.l.s4 1966171168
  %v169 = vunpack.c.0.s8 %v168
  %v170 = vlaneseq
  %v171 = vshrl.u32 %v170, 7
  %v172 = vsub.s32 %v169, %v171
  %v173 = vrot.slane %v98, %v172
  %v175 = vunpack.c.l.s4 1966171168
  %v176 = vunpack.c.0.s8 %v175
  %v177 = vlaneseq
  %v178 = vshrl.u32 %v177, 7
  %v179 = vsub.s32 %v176, %v178
  %v180 = vrot.slane %v99, %v179
  %v181 = vcombine.low %v173, %v180
  %v183 = vunpack.c.l.s4 1966171168
  %v184 = vunpack.c.0.s8 %v183
  %v185 = vlaneseq
  %v186 = vshrl.u32 %v185, 7
  %v187 = vsub.s32 %v184, %v186
  %v188 = vrot.slane %v181, %v187
  %v190 = vmul.f32 %v84, %v188
  %v191 = vadd.f32 %v190, 0.0
  %v192 = vmul.f32 %v97, %v188
  %v193 = vadd.f32 %v192, 0.0
  %v197 = vunpack.c.l.s4 1966171168
  %v198 = vunpack.c.0.s8 %v197
  %v199 = vlaneseq
  %v200 = vshrl.u32 %v199, 7
  %v201 = vsub.s32 %v198, %v200
  %v202 = vrot.slane %v36, %v201
  %v204 = vunpack.c.l.s4 1966171168
  %v205 = vunpack.c.0.s8 %v204
  %v206 = vlaneseq
  %v207 = vshrl.u32 %v206, 7
  %v208 = vsub.s32 %v205, %v207
  %v209 = vrot.slane %v37, %v208
  %v210 = vcombine.low %v202, %v209
  %v212 = vunpack.c.l.s4 1966171168
  %v213 = vunpack.c.0.s8 %v212
  %v214 = vlaneseq
  %v215 = vshrl.u32 %v214, 7
  %v216 = vsub.s32 %v213, %v215
  %v217 = vrot.slane %v210, %v216
  %v219 = vmul.f32 %v97, %v217
  %v220 = vadd.f32 %v219, 0.0
  %v221 = vadd.f32 %v41, 0.0
  %v222 = vadd.f32 %v42, 0.0
  %v223 = vadd.f32 %v160, 0.0
  %v224 = vadd.f32 %v127, 0.0
  %v227 = vlaneseq
  %v228 = vshrl.u32 %v227, 7
  %v229 = vsub.s32 0, %v228
  %v230 = vrot.slane %v161, %v229
  %v231 = vlaneseq
  %v232 = vshrl.u32 %v231, 7
  %v233 = vsub.s32 4, %v232
  %v234 = vrot.slane %v161, %v233
  %v235 = vlaneseq
  %v236 = vshrl.u32 %v235, 7
  %v237 = vsub.s32 0, %v236
  %v238 = vrot.slane %v162, %v237
  %v239 = vlaneseq
  %v240 = vshrl.u32 %v239, 7
  %v241 = vsub.s32 4, %v240
  %v242 = vrot.slane %v162, %v241
  %v249 = vlaneseq
  %v250 = vshrl.u32 %v249, 7
  %v251 = vsub.s32 0, %v250
  %v252 = vrot.slane %v163, %v251
  %v253 = vlaneseq
  %v254 = vshrl.u32 %v253, 7
  %v255 = vsub.s32 4, %v254
  %v256 = vrot.slane %v163, %v255
  %v257 = vlaneseq
  %v258 = vshrl.u32 %v257, 7
  %v259 = vsub.s32 0, %v258
  %v260 = vrot.slane %v164, %v259
  %v261 = vlaneseq
  %v262 = vshrl.u32 %v261, 7
  %v263 = vsub.s32 4, %v262
  %v264 = vrot.slane %v164, %v263
  %v270 = vlaneseq
  %v271 = vshrl.u32 %v270, 7
  %v272 = vsub.s32 0, %v271
  %v273 = vrot.slane %v191, %v272
  %v274 = vlaneseq
  %v275 = vshrl.u32 %v274, 7
  %v276 = vsub.s32 1, %v275
  %v277 = vrot.slane %v191, %v276
  %v278 = vlaneseq
  %v279 = vshrl.u32 %v278, 7
  %v280 = vsub.s32 2, %v279
  %v281 = vrot.slane %v191, %v280
  %v282 = vlaneseq
  %v283 = vshrl.u32 %v282, 7
  %v284 = vsub.s32 3, %v283
  %v285 = vrot.slane %v191, %v284
  %v291 = vlaneseq
  %v292 = vshrl.u32 %v291, 7
  %v293 = vsub.s32 0, %v292
  %v294 = vrot.slane %v193, %v293
  %v295 = vlaneseq
  %v296 = vshrl.u32 %v295, 7
  %v297 = vsub.s32 1, %v296
  %v298 = vrot.slane %v193, %v297
  %v299 = vlaneseq
  %v300 = vshrl.u32 %v299, 7
  %v301 = vsub.s32 2, %v300
  %v302 = vrot.slane %v193, %v301
  %v303 = vlaneseq
  %v304 = vshrl.u32 %v303, 7
  %v305 = vsub.s32 3, %v304
  %v306 = vrot.slane %v193, %v305
  %v312 = vlaneseq
  %v313 = vshrl.u32 %v312, 7
  %v314 = vsub.s32 0, %v313
  %v315 = vrot.slane %v220, %v314
  %v316 = vlaneseq
  %v317 = vshrl.u32 %v316, 7
  %v318 = vsub.s32 1, %v317
  %v319 = vrot.slane %v220, %v318
  %v320 = vlaneseq
  %v321 = vshrl.u32 %v320, 7
  %v322 = vsub.s32 2, %v321
  %v323 = vrot.slane %v220, %v322
  %v324 = vlaneseq
  %v325 = vshrl.u32 %v324, 7
  %v326 = vsub.s32 3, %v325
  %v327 = vrot.slane %v220, %v326
  %v334 = vlaneseq
  %v335 = vshrl.u32 %v334, 7
  %v336 = vsub.s32 0, %v335
  %v337 = vrot.slane %v221, %v336
  %v338 = vlaneseq
  %v339 = vshrl.u32 %v338, 7
  %v340 = vsub.s32 4, %v339
  %v341 = vrot.slane %v221, %v340
  %v342 = vlaneseq
  %v343 = vshrl.u32 %v342, 7
  %v344 = vsub.s32 0, %v343
  %v345 = vrot.slane %v222, %v344
  %v346 = vlaneseq
  %v347 = vshrl.u32 %v346, 7
  %v348 = vsub.s32 4, %v347
  %v349 = vrot.slane %v222, %v348
  %v355 = vlaneseq
  %v356 = vshrl.u32 %v355, 7
  %v357 = vsub.s32 0, %v356
  %v358 = vrot.slane %v223, %v357
  %v359 = vlaneseq
  %v360 = vshrl.u32 %v359, 7
  %v361 = vsub.s32 1, %v360
  %v362 = vrot.slane %v223, %v361
  %v363 = vlaneseq
  %v364 = vshrl.u32 %v363, 7
  %v365 = vsub.s32 2, %v364
  %v366 = vrot.slane %v223, %v365
  %v367 = vlaneseq
  %v368 = vshrl.u32 %v367, 7
  %v369 = vsub.s32 3, %v368
  %v370 = vrot.slane %v223, %v369
  %v376 = vlaneseq
  %v377 = vshrl.u32 %v376, 7
  %v378 = vsub.s32 0, %v377
  %v379 = vrot.slane %v224, %v378
  %v380 = vlaneseq
  %v381 = vshrl.u32 %v380, 7
  %v382 = vsub.s32 1, %v381
  %v383 = vrot.slane %v224, %v382
  %v384 = vlaneseq
  %v385 = vshrl.u32 %v384, 7
  %v386 = vsub.s32 2, %v385
  %v387 = vrot.slane %v224, %v386
  %v388 = vlaneseq
  %v389 = vshrl.u32 %v388, 7
  %v390 = vsub.s32 3, %v389
  %v391 = vrot.slane %v224, %v390
  %vm396 = vcmask 1040384
  %v397 = vsel %vm396, %v230, %v252
  %v398 = vsel %vm396, %v234, %v256
  %v399 = vsel %vm396, %v238, %v260
  %v400 = vsel %vm396, %v242, %v264
  %vm401 = vcmask 1041408
  %v402 = vsel %vm401, %v397, %v273
  %v403 = vsel %vm401, %v398, %v277
  %v404 = vsel %vm401, %v399, %v281
  %v405 = vsel %vm401, %v400, %v285
  %vm406 = vcmask 1042432
  %v407 = vsel %vm406, %v402, %v294
  %v408 = vsel %vm406, %v403, %v298
  %v409 = vsel %vm406, %v404, %v302
  %v410 = vsel %vm406, %v405, %v306
  %vm411 = vcmask 1043456
  %v412 = vsel %vm411, %v407, %v315
  %v413 = vsel %vm411, %v408, %v319
  %v414 = vsel %vm411, %v409, %v323
  %v415 = vsel %vm411, %v410, %v327
  %vm416 = vcmask 1044480
  %v417 = vsel %vm416, %v412, %v337
  %v418 = vsel %vm416, %v413, %v341
  %v419 = vsel %vm416, %v414, %v345
  %v420 = vsel %vm416, %v415, %v349
  %vm421 = vcmask 1045504
  %v422 = vsel %vm421, %v417, %v358
  %v423 = vsel %vm421, %v418, %v362
  %v424 = vsel %vm421, %v419, %v366
  %v425 = vsel %vm421, %v420, %v370
  %vm426 = vcmask 1046528
  %v427 = vsel %vm426, %v422, %v379
  %v428 = vsel %vm426, %v423, %v383
  %v429 = vsel %vm426, %v424, %v387
  %v430 = vsel %vm426, %v425, %v391
  %431 = vst [vmem:[%s7] sm:$0xff] %v427
  %432 = vst [vmem:[%s7 + $0x8] sm:$0xff] %v428
  %433 = vst [vmem:[%s7 + $0x10] sm:$0xff] %v429
  %434 = vst [vmem:[%s7 + $0x18] sm:$0xff] %v430
  // Predicated region
  $region26: #{compute_loss.1} parent=0 // pred_check
    _
  $region27: #{compute_loss.1} parent=0 // pred_check_branch
    %436 = sbr.rel (0) target = $region29
  $region28: #{compute_loss.1} parent=0 // pred_region
    _
  $region29: #{compute_loss.1} parent=0 // pred_fallthru
    _
  // Predicated region
  $region30: #{compute_loss.1} parent=0 // pred_check
    _
  $region31: #{compute_loss.1} parent=0 // pred_check_branch
    %438 = sbr.rel (0) target = $region33
  $region32: #{compute_loss.1} parent=0 // pred_region
    _
  $region33: #{compute_loss.1} parent=0 // pred_fallthru
    _
  // Predicated region
  $region34: #{compute_loss.1} parent=0 // pred_check
    _
  $region35: #{compute_loss.1} parent=0 // pred_check_branch
    %440 = sbr.rel (0) target = $region37
  $region36: #{compute_loss.1} parent=0 // pred_region
    _
  $region37: #{compute_loss.1} parent=0 // pred_fallthru
    _
  // Predicated region
  $region38: #{compute_loss.1} parent=0 // pred_check
    _
  $region39: #{compute_loss.1} parent=0 // pred_check_branch
    %442 = sbr.rel (0) target = $region41
  $region40: #{compute_loss.1} parent=0 // pred_region
    _
  $region41: #{compute_loss.1} parent=0 // pred_fallthru
    _

</llo_original>
